<compile_context>
chip_gen: v5e
topology: v5e:2x2
jax: 0.10.0
libtpu: 0.0.40
codegen_flags: <defaults>
</compile_context>

<pallas_src>
import math

import jax
import jax.numpy as jnp
from jax import lax
from jax.experimental import pallas as pl
from jax.experimental.pallas import tpu as pltpu

_EPSILON = 1e-6
_INV_SQRT_2PI = 1.0 / math.sqrt(2.0 * math.pi)
_INV_SQRT_2 = 1.0 / math.sqrt(2.0)

_LANES = 128
_SUBLANES = 8
# ~1 MiB per f32 buffer; (2 inputs + 2 outputs) double-buffered -> ~8 MiB VMEM,
# safely under the scoped limits on v5e / v6e / v7x.
_MAX_TILE_ROWS = 2048


def _std_pdf(x):
    # exp(Normal(0,1).log_prob(x)) == exp(-x^2/2) / sqrt(2*pi)
    return jnp.exp(-0.5 * x * x) * _INV_SQRT_2PI


def _std_cdf(x):
    # Normal(0,1).cdf(x) == 0.5 * (1 + erf(x / sqrt(2)))
    return 0.5 * (1.0 + lax.erf(x * _INV_SQRT_2))


def _lprelu1_kernel(m_ref, v_ref, m_out_ref, v_out_ref):
    m_in = m_ref[...].astype(jnp.float32)
    v_in = v_ref[...].astype(jnp.float32)

    # One EUP push (rsqrt) instead of sqrt + two divides.
    v_clamped = jnp.maximum(v_in, _EPSILON)
    inv_sigma = lax.rsqrt(v_clamped)
    sigma = v_clamped * inv_sigma  # == sqrt(v_clamped)

    one_shifted = (1.0 - m_in) * inv_sigma
    zero_shifted = -m_in * inv_sigma

    pdf_one = _std_pdf(one_shifted)
    pdf_zero = _std_pdf(zero_shifted)
    cdf_one = _std_cdf(one_shifted)
    cdf_zero = _std_cdf(zero_shifted)
    delta_cdf = cdf_one - cdf_zero

    m_out = sigma * (pdf_zero - pdf_one) + m_in * delta_cdf + 1.0 - cdf_one

    m_out_sq = m_out * m_out
    m_in_sq = m_in * m_in

    # Factored form of the reference v_out expression (hoisted shared subexprs).
    a = m_in_sq - 2.0 * m_in * m_out + v_in
    b = (m_in - 2.0 * m_out) * sigma

    v_out = (
        a * delta_cdf
        + (2.0 * m_out - 1.0) * cdf_one
        - (b + sigma) * pdf_one
        + b * pdf_zero
        + m_out_sq
        - 2.0 * m_out
        + 1.0
    )

    m_out_ref[...] = m_out.astype(m_out_ref.dtype)
    v_out_ref[...] = v_out.astype(v_out_ref.dtype)


def lprelu1(m_in, v_in):
    """Pallas TPU implementation of LPReLU1.forward((m_in, v_in))."""
    assert m_in.shape == v_in.shape
    orig_shape = m_in.shape
    m_dtype = m_in.dtype
    v_dtype = v_in.dtype

    # No pre-casting of v_in: the kernel casts to f32 internally, outputs keep
    # each input's dtype on the wire.
    m_flat = m_in.reshape(-1)
    v_flat = v_in.reshape(-1)

    total = m_flat.shape[0]
    pad = (-total) % _LANES  # only need lane divisibility; rows can be anything
    if pad:
        # Slow path only when total % 128 != 0 (pad is a full-array copy).
        m_flat = jnp.pad(m_flat, (0, pad))
        v_flat = jnp.pad(v_flat, (0, pad), constant_values=1.0)  # keep sigma sane

    rows = (total + pad) // _LANES
    m2d = m_flat.reshape(rows, _LANES)
    v2d = v_flat.reshape(rows, _LANES)

    if rows <= _MAX_TILE_ROWS:
        tile_rows = rows  # full-extent block: always a legal block shape
    else:
        tile_rows = _MAX_TILE_ROWS  # multiple of 8; partial last block is clipped by Pallas
    grid = (pl.cdiv(rows, tile_rows),)
    block = pl.BlockSpec((tile_rows, _LANES), lambda i: (i, 0))

    m_out2d, v_out2d = pl.pallas_call(
        _lprelu1_kernel,
        out_shape=(
            jax.ShapeDtypeStruct((rows, _LANES), m_dtype),
            jax.ShapeDtypeStruct((rows, _LANES), v_dtype),
        ),
        grid_spec=pltpu.PrefetchScalarGridSpec(
            num_scalar_prefetch=0,
            grid=grid,
            in_specs=[block, block],
            out_specs=(block, block),
        ),
        compiler_params=pltpu.CompilerParams(
            dimension_semantics=("parallel",),
            vmem_limit_bytes=32 * 1024 * 1024,
        ),
    )(m2d, v2d)

    if pad:
        m_out = m_out2d.reshape(-1)[:total].reshape(orig_shape)
        v_out = v_out2d.reshape(-1)[:total].reshape(orig_shape)
    else:
        m_out = m_out2d.reshape(orig_shape)
        v_out = v_out2d.reshape(orig_shape)
    return m_out, v_out


def _lprelu1_ref(m_in, v_in, epsilon=_EPSILON):
    # Pure-JAX reference mirroring the PyTorch forward_relu1.
    sigma = jnp.sqrt(jnp.maximum(v_in, epsilon))
    one_shifted = (1.0 - m_in) / sigma
    zero_shifted = -(m_in / sigma)
    pdf_one = _std_pdf(one_shifted)
    pdf_zero = _std_pdf(zero_shifted)
    cdf_one = _std_cdf(one_shifted)
    cdf_zero = _std_cdf(zero_shifted)
    m_out = sigma * (pdf_zero - pdf_one) + m_in * (cdf_one - cdf_zero) + 1.0 - cdf_one
    m_out_sq = jnp.square(m_out)
    m_in_sq = jnp.square(m_in)
    v_out = (
        (m_in_sq - 2 * m_in * m_out + v_in + 2 * m_out - 1) * cdf_one
        - (m_in_sq - 2 * m_in * m_out + v_in) * cdf_zero
        - (m_in * sigma - 2 * m_out * sigma + sigma) * pdf_one
        + (m_in * sigma - 2 * m_out * sigma) * pdf_zero
        + m_out_sq
        - 2 * m_out
        + 1
    )
    return m_out, v_out


if __name__ == "__main__":
    key = jax.random.PRNGKey(0)
    k_m, k_v = jax.random.split(key)
    # NCHW activation moments: mean and variance of the same shape.
    m_in = jax.random.normal(k_m, (2, 4, 16, 16), dtype=jnp.float32)
    v_in = jax.random.uniform(k_v, (2, 4, 16, 16), dtype=jnp.float32, minval=0.0, maxval=2.0)

    m_out, v_out = lprelu1(m_in, v_in)
    jax.block_until_ready((m_out, v_out))

    m_ref, v_ref = _lprelu1_ref(m_in, v_in)
    assert m_out.shape == m_in.shape and v_out.shape == v_in.shape
    assert jnp.allclose(m_out, m_ref, atol=1e-5, rtol=1e-5)
    assert jnp.allclose(v_out, v_ref, atol=1e-5, rtol=1e-5)

    # Also exercise the padded (total % 128 != 0) slow path once.
    m_small = jax.random.normal(k_m, (3, 5, 7), dtype=jnp.float32)
    v_small = jax.random.uniform(k_v, (3, 5, 7), dtype=jnp.float32, minval=0.0, maxval=2.0)
    m_o2, v_o2 = lprelu1(m_small, v_small)
    jax.block_until_ready((m_o2, v_o2))
    m_r2, v_r2 = _lprelu1_ref(m_small, v_small)
    assert jnp.allclose(m_o2, m_r2, atol=1e-5, rtol=1e-5)
    assert jnp.allclose(v_o2, v_r2, atol=1e-5, rtol=1e-5)

    print("KERNEL_OK")
</pallas_src>

<mosaic_0001>
module attributes {stable_mosaic.version = 11 : i64} {
  func.func @_lprelu1_kernel(%arg0: i32, %arg1: memref<16x128xf32, #tpu.memory_space<vmem>>, %arg2: memref<16x128xf32, #tpu.memory_space<vmem>>, %arg3: memref<16x128xf32, #tpu.memory_space<vmem>>, %arg4: memref<16x128xf32, #tpu.memory_space<vmem>>) attributes {dimension_semantics = [#tpu.dimension_semantics<parallel>], iteration_bounds = array<i64: 1>, scalar_prefetch = 0 : i64, scratch_operands = 0 : i64, tpu.core_type = #tpu.core_type<tc>, window_params = [{transform_indices = @transform_0, window_bounds = array<i64: 16, 128>}, {transform_indices = @transform_1, window_bounds = array<i64: 16, 128>}, {transform_indices = @transform_2, window_bounds = array<i64: 16, 128>}, {transform_indices = @transform_3, window_bounds = array<i64: 16, 128>}]} {
    %c0 = arith.constant 0 : index
    %c0_0 = arith.constant 0 : index
    %0 = vector.load %arg1[%c0, %c0_0] : memref<16x128xf32, #tpu.memory_space<vmem>>, vector<16x128xf32>
    %c0_1 = arith.constant 0 : index
    %c0_2 = arith.constant 0 : index
    %1 = vector.load %arg2[%c0_1, %c0_2] : memref<16x128xf32, #tpu.memory_space<vmem>>, vector<16x128xf32>
    %cst = arith.constant 9.99999997E-7 : f32
    %2 = vector.broadcast %cst : f32 to vector<16x128xf32>
    %3 = arith.maximumf %1, %2 : vector<16x128xf32>
    %4 = math.rsqrt %3 : vector<16x128xf32>
    %5 = arith.mulf %3, %4 : vector<16x128xf32>
    %cst_3 = arith.constant 1.000000e+00 : f32
    %6 = vector.broadcast %cst_3 : f32 to vector<16x128xf32>
    %7 = arith.subf %6, %0 : vector<16x128xf32>
    %8 = arith.mulf %7, %4 : vector<16x128xf32>
    %cst_4 = arith.constant 0.000000e+00 : f32
    %9 = vector.broadcast %cst_4 : f32 to vector<16x128xf32>
    %10 = arith.subf %9, %0 : vector<16x128xf32>
    %11 = arith.mulf %10, %4 : vector<16x128xf32>
    %cst_5 = arith.constant -5.000000e-01 : f32
    %12 = vector.broadcast %cst_5 : f32 to vector<16x128xf32>
    %13 = arith.mulf %12, %8 : vector<16x128xf32>
    %14 = arith.mulf %13, %8 : vector<16x128xf32>
    %15 = math.exp %14 : vector<16x128xf32>
    %cst_6 = arith.constant 0.398942292 : f32
    %16 = vector.broadcast %cst_6 : f32 to vector<16x128xf32>
    %17 = arith.mulf %15, %16 : vector<16x128xf32>
    %cst_7 = arith.constant -5.000000e-01 : f32
    %18 = vector.broadcast %cst_7 : f32 to vector<16x128xf32>
    %19 = arith.mulf %18, %11 : vector<16x128xf32>
    %20 = arith.mulf %19, %11 : vector<16x128xf32>
    %21 = math.exp %20 : vector<16x128xf32>
    %cst_8 = arith.constant 0.398942292 : f32
    %22 = vector.broadcast %cst_8 : f32 to vector<16x128xf32>
    %23 = arith.mulf %21, %22 : vector<16x128xf32>
    %cst_9 = arith.constant 0.707106769 : f32
    %24 = vector.broadcast %cst_9 : f32 to vector<16x128xf32>
    %25 = arith.mulf %8, %24 : vector<16x128xf32>
    %26 = math.erf %25 : vector<16x128xf32>
    %cst_10 = arith.constant 1.000000e+00 : f32
    %27 = vector.broadcast %cst_10 : f32 to vector<16x128xf32>
    %28 = arith.addf %27, %26 : vector<16x128xf32>
    %cst_11 = arith.constant 5.000000e-01 : f32
    %29 = vector.broadcast %cst_11 : f32 to vector<16x128xf32>
    %30 = arith.mulf %29, %28 : vector<16x128xf32>
    %cst_12 = arith.constant 0.707106769 : f32
    %31 = vector.broadcast %cst_12 : f32 to vector<16x128xf32>
    %32 = arith.mulf %11, %31 : vector<16x128xf32>
    %33 = math.erf %32 : vector<16x128xf32>
    %cst_13 = arith.constant 1.000000e+00 : f32
    %34 = vector.broadcast %cst_13 : f32 to vector<16x128xf32>
    %35 = arith.addf %34, %33 : vector<16x128xf32>
    %cst_14 = arith.constant 5.000000e-01 : f32
    %36 = vector.broadcast %cst_14 : f32 to vector<16x128xf32>
    %37 = arith.mulf %36, %35 : vector<16x128xf32>
    %38 = arith.subf %30, %37 : vector<16x128xf32>
    %39 = arith.subf %23, %17 : vector<16x128xf32>
    %40 = arith.mulf %5, %39 : vector<16x128xf32>
    %41 = arith.mulf %0, %38 : vector<16x128xf32>
    %42 = arith.addf %40, %41 : vector<16x128xf32>
    %cst_15 = arith.constant 1.000000e+00 : f32
    %43 = vector.broadcast %cst_15 : f32 to vector<16x128xf32>
    %44 = arith.addf %42, %43 : vector<16x128xf32>
    %45 = arith.subf %44, %30 : vector<16x128xf32>
    %46 = arith.mulf %45, %45 : vector<16x128xf32>
    %47 = arith.mulf %0, %0 : vector<16x128xf32>
    %cst_16 = arith.constant 2.000000e+00 : f32
    %48 = vector.broadcast %cst_16 : f32 to vector<16x128xf32>
    %49 = arith.mulf %48, %0 : vector<16x128xf32>
    %50 = arith.mulf %49, %45 : vector<16x128xf32>
    %51 = arith.subf %47, %50 : vector<16x128xf32>
    %52 = arith.addf %51, %1 : vector<16x128xf32>
    %cst_17 = arith.constant 2.000000e+00 : f32
    %53 = vector.broadcast %cst_17 : f32 to vector<16x128xf32>
    %54 = arith.mulf %53, %45 : vector<16x128xf32>
    %55 = arith.subf %0, %54 : vector<16x128xf32>
    %56 = arith.mulf %55, %5 : vector<16x128xf32>
    %57 = arith.mulf %52, %38 : vector<16x128xf32>
    %cst_18 = arith.constant 2.000000e+00 : f32
    %58 = vector.broadcast %cst_18 : f32 to vector<16x128xf32>
    %59 = arith.mulf %58, %45 : vector<16x128xf32>
    %cst_19 = arith.constant 1.000000e+00 : f32
    %60 = vector.broadcast %cst_19 : f32 to vector<16x128xf32>
    %61 = arith.subf %59, %60 : vector<16x128xf32>
    %62 = arith.mulf %61, %30 : vector<16x128xf32>
    %63 = arith.addf %57, %62 : vector<16x128xf32>
    %64 = arith.addf %56, %5 : vector<16x128xf32>
    %65 = arith.mulf %64, %17 : vector<16x128xf32>
    %66 = arith.subf %63, %65 : vector<16x128xf32>
    %67 = arith.mulf %56, %23 : vector<16x128xf32>
    %68 = arith.addf %66, %67 : vector<16x128xf32>
    %69 = arith.addf %68, %46 : vector<16x128xf32>
    %cst_20 = arith.constant 2.000000e+00 : f32
    %70 = vector.broadcast %cst_20 : f32 to vector<16x128xf32>
    %71 = arith.mulf %70, %45 : vector<16x128xf32>
    %72 = arith.subf %69, %71 : vector<16x128xf32>
    %cst_21 = arith.constant 1.000000e+00 : f32
    %73 = vector.broadcast %cst_21 : f32 to vector<16x128xf32>
    %74 = arith.addf %72, %73 : vector<16x128xf32>
    %c0_22 = arith.constant 0 : index
    %c0_23 = arith.constant 0 : index
    %75 = vector.load %arg3[%c0_22, %c0_23] : memref<16x128xf32, #tpu.memory_space<vmem>>, vector<16x128xf32>
    tpu.vector_store %arg3[%c0_22, %c0_23], %45 {strides = array<i32>} : memref<16x128xf32, #tpu.memory_space<vmem>>, vector<16x128xf32>,
    %c0_24 = arith.constant 0 : index
    %c0_25 = arith.constant 0 : index
    %76 = vector.load %arg4[%c0_24, %c0_25] : memref<16x128xf32, #tpu.memory_space<vmem>>, vector<16x128xf32>
    tpu.vector_store %arg4[%c0_24, %c0_25], %74 {strides = array<i32>} : memref<16x128xf32, #tpu.memory_space<vmem>>, vector<16x128xf32>,
    return
  }
  func.func @transform_0(%arg0: i32) -> (i32, i32) {
    %c0_i32 = arith.constant 0 : i32
    %c0_i32_0 = arith.constant 0 : i32
    return %arg0, %c0_i32 : i32, i32
  }
  func.func @transform_1(%arg0: i32) -> (i32, i32) {
    %c0_i32 = arith.constant 0 : i32
    %c0_i32_0 = arith.constant 0 : i32
    return %arg0, %c0_i32 : i32, i32
  }
  func.func @transform_2(%arg0: i32) -> (i32, i32) {
    %c0_i32 = arith.constant 0 : i32
    %c0_i32_0 = arith.constant 0 : i32
    return %arg0, %c0_i32 : i32, i32
  }
  func.func @transform_3(%arg0: i32) -> (i32, i32) {
    %c0_i32 = arith.constant 0 : i32
    %c0_i32_0 = arith.constant 0 : i32
    return %arg0, %c0_i32 : i32, i32
  }
}

</mosaic_0001>

<llo_original>
// kernel: tpu_custom_call.1
$region0: #{tpu_custom_call.1}
  #allocation0 [shape = 'u32[]', space=smem, size = 0x4, offset = 0x4, fixed_abs, tag = 'smem constant byte address 0x4 - core index']
  #allocation1 [shape = 'u32[72,128]{1,0:T(1,128)}', space=vmem, size = 0x9000, scoped, tag = 'internal scratch']
  %s0 = inlined_call_operand.hbm [shape: f32[16,128], index: 0, kind: input, shape index: {}]
  %s1 = inlined_call_operand.hbm [shape: f32[16,128], index: 1, kind: input, shape index: {}]
  %s2 = inlined_call_operand.hbm [shape: f32[16,128], index: 2, kind: output, shape index: {0}]
  %s3 = inlined_call_operand.hbm [shape: f32[16,128], index: 3, kind: output, shape index: {1}]
  %4 = xla_tuple %s2, %s3
  %s5 = sld [smem:[#allocation0]]
  $region34: #{tpu_custom_call.1} parent=0
    _
  %s7 = ssub.s32 1, %s5
  %s8 = scalar_select 0, %s7, %s5
  $region1: #{tpu_custom_call.1} parent=0
    #allocation2 [shape = 'u8[8192]{0}', space=vmem, size = 0x2000, scoped, tag = 'input window, operand 0, single buffered']
    #allocation3 [shape = 's32[1]{0}', space=sflag, size = 0x4, scoped, tag = 'scoped memory for tpu_custom_call.1']
    #allocation4 [shape = 's32[1]{0}', space=sflag, size = 0x4, scoped, tag = 'scoped memory for tpu_custom_call.1']
    #allocation5 [shape = 'u8[8192]{0}', space=vmem, size = 0x2000, scoped, tag = 'input window, operand 1, single buffered']
    #allocation6 [shape = 's32[1]{0}', space=sflag, size = 0x4, scoped, tag = 'scoped memory for tpu_custom_call.1']
    #allocation7 [shape = 'u8[8192]{0}', space=vmem, size = 0x2000, scoped, tag = 'output window, operand 0, single buffered']
    #allocation8 [shape = 'u8[8192]{0}', space=vmem, size = 0x2000, scoped, tag = 'output window, operand 1, single buffered']
    #allocation9 [shape = 's32[1]{0}', space=sflag, size = 0x4, scoped, tag = 'scoped memory for tpu_custom_call.1']
    %9 = vsyncpa [#allocation3], 0
    %10 = vsyncpa [#allocation6], 0
    %11 = vsyncpa [#allocation4], 0
    %12 = vsyncpa [#allocation9], 0
    // Predicated region
    $region2: #{tpu_custom_call.1} parent=1 // pred_check
      _
    $region3: #{tpu_custom_call.1} parent=1 // pred_check_branch
      %14 = sbr.rel (0) target = $region5
    $region4: #{tpu_custom_call.1} parent=1 // pred_region
      %16 = vsyncadd [#allocation3], 0
      %s17 = sshll.u32 %s0, 4
      %s18 = int_to_ptr.hbm [resolvable:$true] %s17
      %s19 = sshll.u32 [#allocation2], 4
      %s20 = int_to_ptr.vmem [resolvable:$true] %s19
      %25 = dma.hbm_to_vmem [thread:$0]  %s18, 256, %s20, [#allocation3], 128, 128, 8
    $region5: #{tpu_custom_call.1} parent=1 // pred_fallthru
      _
    // Predicated region
    $region6: #{tpu_custom_call.1} parent=1 // pred_check
      _
    $region7: #{tpu_custom_call.1} parent=1 // pred_check_branch
      %27 = sbr.rel (0) target = $region9
    $region8: #{tpu_custom_call.1} parent=1 // pred_region
      %29 = vsyncadd [#allocation6], 0
      %s30 = sshll.u32 %s1, 4
      %s31 = int_to_ptr.hbm [resolvable:$true] %s30
      %s32 = sshll.u32 [#allocation5], 4
      %s33 = int_to_ptr.vmem [resolvable:$true] %s32
      %38 = dma.hbm_to_vmem [thread:$0]  %s31, 256, %s33, [#allocation6], 128, 128, 8
    $region9: #{tpu_custom_call.1} parent=1 // pred_fallthru
      _
    // Predicated region
    $region10: #{tpu_custom_call.1} parent=1 // pred_check
      _
    $region11: #{tpu_custom_call.1} parent=1 // pred_check_branch
      %40 = sbr.rel (0) target = $region13
    $region12: #{tpu_custom_call.1} parent=1 // pred_region
      %42 = dma.done [#allocation3], 256
    $region13: #{tpu_custom_call.1} parent=1 // pred_fallthru
      _
    // Predicated region
    $region14: #{tpu_custom_call.1} parent=1 // pred_check
      _
    $region15: #{tpu_custom_call.1} parent=1 // pred_check_branch
      %44 = sbr.rel (0) target = $region17
    $region16: #{tpu_custom_call.1} parent=1 // pred_region
      %46 = dma.done [#allocation6], 256
    $region17: #{tpu_custom_call.1} parent=1 // pred_fallthru
      _
    %v47 = vld [vmem:[#allocation2] sm:$0xff]
    %v48 = vld [vmem:[#allocation2 + $0x8] sm:$0xff]
    %v49 = vld [vmem:[#allocation5] sm:$0xff]
    %v50 = vld [vmem:[#allocation5 + $0x8] sm:$0xff]
    %v51 = vmax.f32 %v49, 1e-06
    %v52 = vmax.f32 %v50, 1e-06
    %v53 = vrsqrt.pop %v51
    %v54 = vmul.f32 %v53, %v51
    %v55 = vmul.f32 %v54, %v53
    %v56 = vmul.f32 0.5, %v55
    %v57 = vsub.f32 1.5, %v56
    %v58 = vmul.f32 %v53, %v57
    %vm59 = vweird.f32 %v51
    %vm60 = vweird.f32 %v53
    %vm61 = vmor %vm59, %vm60
    %v62 = vsel %vm61, %v53, %v58
    %v63 = vrsqrt.pop %v52
    %v64 = vmul.f32 %v63, %v52
    %v65 = vmul.f32 %v64, %v63
    %v66 = vmul.f32 0.5, %v65
    %v67 = vsub.f32 1.5, %v66
    %v68 = vmul.f32 %v63, %v67
    %vm69 = vweird.f32 %v52
    %vm70 = vweird.f32 %v63
    %vm71 = vmor %vm69, %vm70
    %v72 = vsel %vm71, %v63, %v68
    %v73 = vmul.f32 %v51, %v62
    %v74 = vmul.f32 %v52, %v72
    %v75 = vsub.f32 1.0, %v47
    %v76 = vsub.f32 1.0, %v48
    %v77 = vmul.f32 %v75, %v62
    %v78 = vmul.f32 %v76, %v72
    %v79 = vsub.f32 0.0, %v47
    %v80 = vsub.f32 0.0, %v48
    %v81 = vmul.f32 %v79, %v62
    %v82 = vmul.f32 %v80, %v72
    %v83 = vmul.f32 %v77, -0.5
    %v84 = vmul.f32 %v78, -0.5
    %v85 = vmul.f32 %v83, %v77
    %v86 = vmul.f32 %v84, %v78
    %v87 = vmul.f32 %v85, 1.442695
    %v88 = vpow.pop %v87
    %v89 = vmul.f32 %v86, 1.442695
    %v90 = vpow.pop %v89
    %v91 = vmul.f32 %v88, 0.3989423
    %v92 = vmul.f32 %v90, 0.3989423
    %v93 = vmul.f32 %v81, -0.5
    %v94 = vmul.f32 %v82, -0.5
    %v95 = vmul.f32 %v93, %v81
    %v96 = vmul.f32 %v94, %v82
    %v97 = vmul.f32 %v95, 1.442695
    %v98 = vpow.pop %v97
    %v99 = vmul.f32 %v96, 1.442695
    %v100 = vpow.pop %v99
    %v101 = vmul.f32 %v98, 0.3989423
    %v102 = vmul.f32 %v100, 0.3989423
    %v103 = vmul.f32 %v77, 0.70710677
    %v104 = vmul.f32 %v78, 0.70710677
    %v105 = vmul.f32 %v103, %v103
    %v106 = vmin.f32 16.0, %v105
    %v107 = vmul.f32 %v106, 2.1237322e-06
    %v108 = vadd.f32 %v107, 0.00028619796
    %v109 = vmul.f32 %v106, %v108
    %v110 = vadd.f32 %v109, 0.0036580483
    %v111 = vmul.f32 %v106, %v110
    %v112 = vadd.f32 %v111, 0.05243302
    %v113 = vmul.f32 %v106, %v112
    %v114 = vadd.f32 %v113, 0.18741608
    %v115 = vmul.f32 %v106, %v114
    %v116 = vadd.f32 %v115, 1.1283791
    %v117 = vmul.f32 %v103, %v116
    %v118 = vmul.f32 %v106, 3.8918573e-05
    %v119 = vadd.f32 %v118, 0.001143296
    %v120 = vmul.f32 %v106, %v119
    %v121 = vadd.f32 %v120, 0.014752088
    %v122 = vmul.f32 %v106, %v121
    %v123 = vadd.f32 %v122, 0.112945676
    %v124 = vmul.f32 %v106, %v123
    %v125 = vadd.f32 %v124, 0.4994258
    %v126 = vmul.f32 %v106, %v125
    %v127 = vadd.f32 %v126, 1.0
    %v128 = vrcp.pop %v127
    %v129 = vmul.f32 %v127, %v128
    %v130 = vsub.f32 1.0, %v129
    %v131 = vmul.f32 %v128, %v130
    %v132 = vadd.f32 %v128, %v131
    %vm133 = vweird.f32 %v127
    %vm134 = vweird.f32 %v128
    %vm135 = vmor %vm133, %vm134
    %v136 = vsel %vm135, %v128, %v132
    %v137 = vand.u32 2147483647, %v127
    %vm138 = vcmp.eq.f32.partialorder %v137, 8.507059e+37
    %v139 = vand.u32 %v127, 2147483648
    %v140 = vor.u32 1.1754944e-38, %v139
    %v141 = vsel %vm138, %v140, %v136
    %v142 = vmul.f32 %v117, %v141
    %v143 = vmin.f32 %v142, 1.0
    %v144 = vmax.f32 %v143, -1.0
    %v145 = vmul.f32 %v104, %v104
    %v146 = vmin.f32 16.0, %v145
    %v147 = vmul.f32 %v146, 2.1237322e-06
    %v148 = vadd.f32 %v147, 0.00028619796
    %v149 = vmul.f32 %v146, %v148
    %v150 = vadd.f32 %v149, 0.0036580483
    %v151 = vmul.f32 %v146, %v150
    %v152 = vadd.f32 %v151, 0.05243302
    %v153 = vmul.f32 %v146, %v152
    %v154 = vadd.f32 %v153, 0.18741608
    %v155 = vmul.f32 %v146, %v154
    %v156 = vadd.f32 %v155, 1.1283791
    %v157 = vmul.f32 %v104, %v156
    %v158 = vmul.f32 %v146, 3.8918573e-05
    %v159 = vadd.f32 %v158, 0.001143296
    %v160 = vmul.f32 %v146, %v159
    %v161 = vadd.f32 %v160, 0.014752088
    %v162 = vmul.f32 %v146, %v161
    %v163 = vadd.f32 %v162, 0.112945676
    %v164 = vmul.f32 %v146, %v163
    %v165 = vadd.f32 %v164, 0.4994258
    %v166 = vmul.f32 %v146, %v165
    %v167 = vadd.f32 %v166, 1.0
    %v168 = vrcp.pop %v167
    %v169 = vmul.f32 %v167, %v168
    %v170 = vsub.f32 1.0, %v169
    %v171 = vmul.f32 %v168, %v170
    %v172 = vadd.f32 %v168, %v171
    %vm173 = vweird.f32 %v167
    %vm174 = vweird.f32 %v168
    %vm175 = vmor %vm173, %vm174
    %v176 = vsel %vm175, %v168, %v172
    %v177 = vand.u32 2147483647, %v167
    %vm178 = vcmp.eq.f32.partialorder %v177, 8.507059e+37
    %v179 = vand.u32 %v167, 2147483648
    %v180 = vor.u32 1.1754944e-38, %v179
    %v181 = vsel %vm178, %v180, %v176
    %v182 = vmul.f32 %v157, %v181
    %v183 = vmin.f32 %v182, 1.0
    %v184 = vmax.f32 %v183, -1.0
    %v185 = vadd.f32 %v144, 1.0
    %v186 = vadd.f32 %v184, 1.0
    %v187 = vmul.f32 %v185, 0.5
    %v188 = vmul.f32 %v186, 0.5
    %v189 = vmul.f32 %v81, 0.70710677
    %v190 = vmul.f32 %v82, 0.70710677
    %v191 = vmul.f32 %v189, %v189
    %v192 = vmin.f32 16.0, %v191
    %v193 = vmul.f32 %v192, 2.1237322e-06
    %v194 = vadd.f32 %v193, 0.00028619796
    %v195 = vmul.f32 %v192, %v194
    %v196 = vadd.f32 %v195, 0.0036580483
    %v197 = vmul.f32 %v192, %v196
    %v198 = vadd.f32 %v197, 0.05243302
    %v199 = vmul.f32 %v192, %v198
    %v200 = vadd.f32 %v199, 0.18741608
    %v201 = vmul.f32 %v192, %v200
    %v202 = vadd.f32 %v201, 1.1283791
    %v203 = vmul.f32 %v189, %v202
    %v204 = vmul.f32 %v192, 3.8918573e-05
    %v205 = vadd.f32 %v204, 0.001143296
    %v206 = vmul.f32 %v192, %v205
    %v207 = vadd.f32 %v206, 0.014752088
    %v208 = vmul.f32 %v192, %v207
    %v209 = vadd.f32 %v208, 0.112945676
    %v210 = vmul.f32 %v192, %v209
    %v211 = vadd.f32 %v210, 0.4994258
    %v212 = vmul.f32 %v192, %v211
    %v213 = vadd.f32 %v212, 1.0
    %v214 = vrcp.pop %v213
    %v215 = vmul.f32 %v213, %v214
    %v216 = vsub.f32 1.0, %v215
    %v217 = vmul.f32 %v214, %v216
    %v218 = vadd.f32 %v214, %v217
    %vm219 = vweird.f32 %v213
    %vm220 = vweird.f32 %v214
    %vm221 = vmor %vm219, %vm220
    %v222 = vsel %vm221, %v214, %v218
    %v223 = vand.u32 2147483647, %v213
    %vm224 = vcmp.eq.f32.partialorder %v223, 8.507059e+37
    %v225 = vand.u32 %v213, 2147483648
    %v226 = vor.u32 1.1754944e-38, %v225
    %v227 = vsel %vm224, %v226, %v222
    %v228 = vmul.f32 %v203, %v227
    %v229 = vmin.f32 %v228, 1.0
    %v230 = vmax.f32 %v229, -1.0
    %v231 = vmul.f32 %v190, %v190
    %v232 = vmin.f32 16.0, %v231
    %v233 = vmul.f32 %v232, 2.1237322e-06
    %v234 = vadd.f32 %v233, 0.00028619796
    %v235 = vmul.f32 %v232, %v234
    %v236 = vadd.f32 %v235, 0.0036580483
    %v237 = vmul.f32 %v232, %v236
    %v238 = vadd.f32 %v237, 0.05243302
    %v239 = vmul.f32 %v232, %v238
    %v240 = vadd.f32 %v239, 0.18741608
    %v241 = vmul.f32 %v232, %v240
    %v242 = vadd.f32 %v241, 1.1283791
    %v243 = vmul.f32 %v190, %v242
    %v244 = vmul.f32 %v232, 3.8918573e-05
    %v245 = vadd.f32 %v244, 0.001143296
    %v246 = vmul.f32 %v232, %v245
    %v247 = vadd.f32 %v246, 0.014752088
    %v248 = vmul.f32 %v232, %v247
    %v249 = vadd.f32 %v248, 0.112945676
    %v250 = vmul.f32 %v232, %v249
    %v251 = vadd.f32 %v250, 0.4994258
    %v252 = vmul.f32 %v232, %v251
    %v253 = vadd.f32 %v252, 1.0
    %v254 = vrcp.pop %v253
    %v255 = vmul.f32 %v253, %v254
    %v256 = vsub.f32 1.0, %v255
    %v257 = vmul.f32 %v254, %v256
    %v258 = vadd.f32 %v254, %v257
    %vm259 = vweird.f32 %v253
    %vm260 = vweird.f32 %v254
    %vm261 = vmor %vm259, %vm260
    %v262 = vsel %vm261, %v254, %v258
    %v263 = vand.u32 2147483647, %v253
    %vm264 = vcmp.eq.f32.partialorder %v263, 8.507059e+37
    %v265 = vand.u32 %v253, 2147483648
    %v266 = vor.u32 1.1754944e-38, %v265
    %v267 = vsel %vm264, %v266, %v262
    %v268 = vmul.f32 %v243, %v267
    %v269 = vmin.f32 %v268, 1.0
    %v270 = vmax.f32 %v269, -1.0
    %v271 = vadd.f32 %v230, 1.0
    %v272 = vadd.f32 %v270, 1.0
    %v273 = vmul.f32 %v271, 0.5
    %v274 = vmul.f32 %v272, 0.5
    %v275 = vsub.f32 %v187, %v273
    %v276 = vsub.f32 %v188, %v274
    %v277 = vsub.f32 %v101, %v91
    %v278 = vsub.f32 %v102, %v92
    %v279 = vmul.f32 %v73, %v277
    %v280 = vmul.f32 %v74, %v278
    %v281 = vmul.f32 %v47, %v275
    %v282 = vmul.f32 %v48, %v276
    %v283 = vadd.f32 %v279, %v281
    %v284 = vadd.f32 %v280, %v282
    %v285 = vadd.f32 %v283, 1.0
    %v286 = vadd.f32 %v284, 1.0
    %v287 = vsub.f32 %v285, %v187
    %v288 = vsub.f32 %v286, %v188
    %v289 = vmul.f32 %v287, %v287
    %v290 = vmul.f32 %v288, %v288
    %v291 = vmul.f32 %v47, %v47
    %v292 = vmul.f32 %v48, %v48
    %v293 = vmul.f32 %v47, 2.0
    %v294 = vmul.f32 %v48, 2.0
    %v295 = vmul.f32 %v293, %v287
    %v296 = vmul.f32 %v294, %v288
    %v297 = vsub.f32 %v291, %v295
    %v298 = vsub.f32 %v292, %v296
    %v299 = vadd.f32 %v297, %v49
    %v300 = vadd.f32 %v298, %v50
    %v301 = vmul.f32 %v287, 2.0
    %v302 = vmul.f32 %v288, 2.0
    %v303 = vsub.f32 %v47, %v301
    %v304 = vsub.f32 %v48, %v302
    %v305 = vmul.f32 %v303, %v73
    %v306 = vmul.f32 %v304, %v74
    %v307 = vmul.f32 %v299, %v275
    %v308 = vmul.f32 %v300, %v276
    %v309 = vsub.f32 %v301, 1.0
    %v310 = vsub.f32 %v302, 1.0
    %v311 = vmul.f32 %v309, %v187
    %v312 = vmul.f32 %v310, %v188
    %v313 = vadd.f32 %v307, %v311
    %v314 = vadd.f32 %v308, %v312
    %v315 = vadd.f32 %v305, %v73
    %v316 = vadd.f32 %v306, %v74
    %v317 = vmul.f32 %v315, %v91
    %v318 = vmul.f32 %v316, %v92
    %v319 = vsub.f32 %v313, %v317
    %v320 = vsub.f32 %v314, %v318
    %v321 = vmul.f32 %v305, %v101
    %v322 = vmul.f32 %v306, %v102
    %v323 = vadd.f32 %v319, %v321
    %v324 = vadd.f32 %v320, %v322
    %v325 = vadd.f32 %v323, %v289
    %v326 = vadd.f32 %v324, %v290
    %v327 = vsub.f32 %v325, %v301
    %v328 = vsub.f32 %v326, %v302
    %v329 = vadd.f32 %v327, 1.0
    %v330 = vadd.f32 %v328, 1.0
    %331 = vst [vmem:[#allocation7] sm:$0xff] %v287
    %332 = vst [vmem:[#allocation7 + $0x8] sm:$0xff] %v288
    %333 = vst [vmem:[#allocation8] sm:$0xff] %v329
    %334 = vst [vmem:[#allocation8 + $0x8] sm:$0xff] %v330
    // Predicated region
    $region18: #{tpu_custom_call.1} parent=1 // pred_check
      _
    $region19: #{tpu_custom_call.1} parent=1 // pred_check_branch
      %336 = sbr.rel (0) target = $region21
    $region20: #{tpu_custom_call.1} parent=1 // pred_region
      %338 = vsyncadd [#allocation4], 0
      %s339 = sshll.u32 [#allocation7], 4
      %s340 = int_to_ptr.vmem [resolvable:$true] %s339
      %s341 = sshll.u32 %s2, 4
      %s342 = int_to_ptr.hbm [resolvable:$true] %s341
      %347 = dma.vmem_to_hbm [thread:$0]  %s340, 256, %s342, [#allocation4], 128, 128, 8
    $region21: #{tpu_custom_call.1} parent=1 // pred_fallthru
      _
    // Predicated region
    $region22: #{tpu_custom_call.1} parent=1 // pred_check
      _
    $region23: #{tpu_custom_call.1} parent=1 // pred_check_branch
      %349 = sbr.rel (0) target = $region25
    $region24: #{tpu_custom_call.1} parent=1 // pred_region
      %351 = vsyncadd [#allocation9], 0
      %s352 = sshll.u32 [#allocation8], 4
      %s353 = int_to_ptr.vmem [resolvable:$true] %s352
      %s354 = sshll.u32 %s3, 4
      %s355 = int_to_ptr.hbm [resolvable:$true] %s354
      %360 = dma.vmem_to_hbm [thread:$0]  %s353, 256, %s355, [#allocation9], 128, 128, 8
    $region25: #{tpu_custom_call.1} parent=1 // pred_fallthru
      _
    // Predicated region
    $region26: #{tpu_custom_call.1} parent=1 // pred_check
      _
    $region27: #{tpu_custom_call.1} parent=1 // pred_check_branch
      %362 = sbr.rel (0) target = $region29
    $region28: #{tpu_custom_call.1} parent=1 // pred_region
      %364 = dma.done [#allocation4], 256
    $region29: #{tpu_custom_call.1} parent=1 // pred_fallthru
      _
    // Predicated region
    $region30: #{tpu_custom_call.1} parent=1 // pred_check
      _
    $region31: #{tpu_custom_call.1} parent=1 // pred_check_branch
      %366 = sbr.rel (0) target = $region33
    $region32: #{tpu_custom_call.1} parent=1 // pred_region
      %368 = dma.done [#allocation9], 256
    $region33: #{tpu_custom_call.1} parent=1 // pred_fallthru
      _
    %369 = vsyncpa [#allocation3], 1
    %370 = vsyncpa [#allocation6], 1
    %371 = vsyncpa [#allocation4], 1
    %372 = vsyncpa [#allocation9], 1

</llo_original>
